<compile_context>
chip_gen: v5e
topology: v5e:2x2
jax: 0.10.0
libtpu: 0.0.40
codegen_flags: <defaults>
</compile_context>

<pallas_src>
import math

import jax
import jax.numpy as jnp
from jax.experimental import pallas as pl
from jax.experimental.pallas import tpu as pltpu


def _make_kernel(gamma, C, tile_s, s_true, needs_mask):
    gamma_is_two = (float(gamma) == 2.0)
    inv_c = 1.0 / C

    def kernel(pred_ref, tgt_ref, inter_ref, union_ref, focal_ref):
        s = pl.program_id(1)

        @pl.when(s == 0)
        def _():
            inter_ref[...] = jnp.zeros_like(inter_ref)
            union_ref[...] = jnp.zeros_like(union_ref)
            focal_ref[...] = jnp.zeros_like(focal_ref)

        logits = pred_ref[0].astype(jnp.float32)          # (C, TS) f32
        tgt = tgt_ref[0].astype(jnp.int32)                # (1, TS) i32 (from int8)
        TS = logits.shape[1]

        if needs_mask:
            lane = jax.lax.broadcasted_iota(jnp.int32, (1, TS), 1)
            valid = (s * tile_s + lane) < s_true          # (1, TS) bool
            # NaN-safety: the partial last block reads unspecified garbage past
            # the true extent -> zero logits/targets there so exp/log never see
            # inf/NaN, then zero every tail contribution below.
            logits = jnp.where(valid, logits, 0.0)
            tgt = jnp.where(valid, tgt, 0)

        # --- softmax over the channel (sublane) axis ---
        m = jnp.max(logits, axis=0, keepdims=True)        # (1, TS)
        ex = jnp.exp(logits - m)                          # (C, TS)
        denom = jnp.sum(ex, axis=0, keepdims=True)        # (1, TS)
        r = pl.reciprocal(denom, approx=True)
        r = r * (2.0 - denom * r)                         # one Newton step -> ~f32 accuracy
        prob = ex * r                                     # (C, TS)

        # --- one-hot of target along channel axis ---
        chan = jax.lax.broadcasted_iota(jnp.int32, (C, TS), 0)
        is_t = chan == tgt                                # (C, TS) bool
        onehot = is_t.astype(jnp.float32)
        if needs_mask:
            onehot = jnp.where(valid, onehot, 0.0)

        po = prob * onehot                                # (C, TS)

        # cross entropy: logsumexp - logit[target]
        logit_t = jnp.sum(logits * onehot, axis=0, keepdims=True)   # (1, TS)
        ce = (m + jnp.log(denom)) - logit_t                          # (1, TS)

        # focal-weight mean over channels
        if gamma_is_two:
            # mean_c (1 - p_t_c)^2 == (1 - 2*p_target + sum_c p_c^2) / C  (exact)
            p_t = jnp.sum(po, axis=0, keepdims=True)                 # (1, TS)
            sumsq = jnp.sum(prob * prob, axis=0, keepdims=True)      # (1, TS)
            fw_mean = (1.0 - 2.0 * p_t + sumsq) * inv_c
        else:
            one_minus_pt = jnp.where(is_t, 1.0 - prob, prob)
            fw_mean = jnp.mean(one_minus_pt ** gamma, axis=0, keepdims=True)

        fce = fw_mean * ce                                           # (1, TS)
        if needs_mask:
            fce = jnp.where(valid, fce, 0.0)
            prob_v = jnp.where(valid, prob, 0.0)
        else:
            prob_v = prob

        # per-step lane reductions, accumulated into the resident output blocks
        inter_ref[...] += jnp.sum(po, axis=1, keepdims=True)[None]             # (1,C,1)
        union_ref[...] += jnp.sum(prob_v + onehot, axis=1, keepdims=True)[None]
        focal_ref[...] += jnp.sum(fce, axis=1, keepdims=True)[None]            # (1,1,1)

    return kernel


def _pick_tile_lanes(C, pred_bytes, S, requested=None):
    """Pick the spatial tile width (lanes) with a VMEM-aware budget."""
    if requested is not None:
        tile = int(requested)
    else:
        # Per-lane VMEM estimate: double-buffered pred+tgt input blocks plus
        # ~6 live (C, TS) f32 temporaries and ~10 (1, TS) f32/i32 rows.
        per_lane = 2 * (C * pred_bytes + 1) + (6 * C + 10) * 4
        try:
            vmem = int(getattr(pltpu.get_tpu_info(), "vmem_capacity_bytes", 64 << 20))
        except Exception:  # no TPU info available at trace time
            vmem = 64 << 20                      # conservative (v7x per-TC)
        budget = min(vmem // 4, 16 << 20)        # stays under the raised scoped limit
        tile = min(budget // per_lane, 128 * 1024)
    if tile >= S:
        return S                                  # single full-extent block (any S)
    return max(128, (tile // 128) * 128)


def unified_focal_loss(pred, target, alpha=0.25, gamma=2.0, smooth=1e-5, tile_s=None):
    """pred: (B, C, D, H, W) float/bf16 logits; target: (B, D, H, W) int class ids."""
    B, C = pred.shape[0], pred.shape[1]
    S = int(math.prod(pred.shape[2:]))
    pred_bytes = jnp.dtype(pred.dtype).itemsize

    tile = _pick_tile_lanes(C, pred_bytes, S, tile_s)
    num_steps = int(pl.cdiv(S, tile))
    needs_mask = bool(num_steps * tile != S)      # ragged tail -> in-kernel masking

    pred_f = pred.reshape(B, C, S)                       # view; dtype preserved
    tgt_f = target.reshape(B, 1, S).astype(jnp.int8)     # 1 B/voxel HBM stream

    cost = pl.CostEstimate(
        flops=int(B * S * (14 * C + 12)),
        transcendentals=int(B * S * (C + 1)),
        bytes_accessed=int(B * S * (C * pred_bytes + 1) + B * (2 * C + 1) * 4),
    )

    inter, union, focal_sum = pl.pallas_call(
        _make_kernel(gamma, C, tile, S, needs_mask),
        out_shape=(
            jax.ShapeDtypeStruct((B, C, 1), jnp.float32),   # intersection per (b,c)
            jax.ShapeDtypeStruct((B, C, 1), jnp.float32),   # union per (b,c)
            jax.ShapeDtypeStruct((B, 1, 1), jnp.float32),   # sum(fw_mean*ce) per b
        ),
        grid_spec=pltpu.PrefetchScalarGridSpec(
            num_scalar_prefetch=0,
            grid=(B, num_steps),
            in_specs=[
                pl.BlockSpec((1, C, tile), lambda b, s: (b, 0, s)),
                pl.BlockSpec((1, 1, tile), lambda b, s: (b, 0, s)),
            ],
            out_specs=[
                pl.BlockSpec((1, C, 1), lambda b, s: (b, 0, 0)),
                pl.BlockSpec((1, C, 1), lambda b, s: (b, 0, 0)),
                pl.BlockSpec((1, 1, 1), lambda b, s: (b, 0, 0)),
            ],
        ),
        compiler_params=pltpu.CompilerParams(
            dimension_semantics=("parallel", "arbitrary"),
            vmem_limit_bytes=32 * 1024 * 1024,
        ),
        cost_estimate=cost,
    )(pred_f, tgt_f)

    inter = inter[:, :, 0]                   # (B, C)
    union = union[:, :, 0]                   # (B, C)
    dice = (2.0 * inter + smooth) / (union + smooth)
    dice_loss = 1.0 - jnp.mean(dice)
    focal_ce_mean = jnp.sum(focal_sum) / (B * S)
    return alpha * focal_ce_mean + (1.0 - alpha) * dice_loss


def multitask_uncertainty_loss(seg_pred, seg_target, cls_pred, cls_target,
                               log_sigma_seg, log_sigma_cls,
                               alpha=0.25, gamma=2.0, smooth=1e-5):
    """Forward of MultiTaskUncertaintyLoss with loss_type='focal'."""
    cls_pred = jnp.clip(cls_pred, -10.0, 10.0)
    seg_loss = unified_focal_loss(seg_pred, seg_target,
                                  alpha=alpha, gamma=gamma, smooth=smooth)
    # classification cross-entropy (tiny: kept in plain JAX on purpose)
    logz = jax.scipy.special.logsumexp(cls_pred, axis=1)
    logit_t = jnp.take_along_axis(cls_pred, cls_target[:, None], axis=1)[:, 0]
    cls_loss = jnp.mean(logz - logit_t)
    total = (jnp.exp(-log_sigma_seg) * seg_loss + log_sigma_seg
             + jnp.exp(-log_sigma_cls) * cls_loss + log_sigma_cls)
    return {"loss": total,
            "segmentation_loss": seg_loss,
            "classification_loss": cls_loss,
            "log_sigma_seg": log_sigma_seg,
            "log_sigma_cls": log_sigma_cls}


# ----------------------------- pure-JAX references ---------------------------

def _reference_unified_focal(pred, target, alpha=0.25, gamma=2.0, smooth=1e-5):
    pred_prob = jax.nn.softmax(pred, axis=1)
    C = pred.shape[1]
    onehot = jnp.transpose(jax.nn.one_hot(target, C, dtype=jnp.float32), (0, 4, 1, 2, 3))
    p_t = jnp.where(onehot == 1, pred_prob, 1.0 - pred_prob)
    fw = (1.0 - p_t) ** gamma
    inter = jnp.sum(pred_prob * onehot, axis=(2, 3, 4))
    union = jnp.sum(pred_prob, axis=(2, 3, 4)) + jnp.sum(onehot, axis=(2, 3, 4))
    dice = (2.0 * inter + smooth) / (union + smooth)
    dice_loss = 1.0 - jnp.mean(dice)
    logz = jax.scipy.special.logsumexp(pred, axis=1)
    logit_t = jnp.sum(pred * onehot, axis=1)
    ce = logz - logit_t
    focal_ce = jnp.mean(fw, axis=1) * ce
    return alpha * jnp.mean(focal_ce) + (1.0 - alpha) * dice_loss


def _reference_multitask(seg_pred, seg_target, cls_pred, cls_target,
                         log_sigma_seg, log_sigma_cls,
                         alpha=0.25, gamma=2.0, smooth=1e-5):
    cls_pred = jnp.clip(cls_pred, -10.0, 10.0)
    seg_loss = _reference_unified_focal(seg_pred, seg_target, alpha, gamma, smooth)
    logz = jax.scipy.special.logsumexp(cls_pred, axis=1)
    logit_t = jnp.take_along_axis(cls_pred, cls_target[:, None], axis=1)[:, 0]
    cls_loss = jnp.mean(logz - logit_t)
    total = (jnp.exp(-log_sigma_seg) * seg_loss + log_sigma_seg
             + jnp.exp(-log_sigma_cls) * cls_loss + log_sigma_cls)
    return total, seg_loss, cls_loss


if __name__ == "__main__":
    B, C, D, H, W = 2, 4, 4, 8, 8        # spatial volume = 256
    NUM_CLS = 3
    key = jax.random.PRNGKey(0)
    k1, k2, k3, k4 = jax.random.split(key, 4)

    seg_pred = jax.random.normal(k1, (B, C, D, H, W), dtype=jnp.float32)
    seg_target = jax.random.randint(k2, (B, D, H, W), 0, C, dtype=jnp.int32)
    cls_pred = 3.0 * jax.random.normal(k3, (B, NUM_CLS), dtype=jnp.float32)
    cls_target = jax.random.randint(k4, (B,), 0, NUM_CLS, dtype=jnp.int32)
    # nn.Parameter(torch.zeros(1)) equivalents
    log_sigma_seg = jnp.zeros((1,), jnp.float32)
    log_sigma_cls = jnp.zeros((1,), jnp.float32)

    out = multitask_uncertainty_loss(seg_pred, seg_target, cls_pred, cls_target,
                                     log_sigma_seg, log_sigma_cls)
    out = jax.block_until_ready(out)

    ref_total, ref_seg, ref_cls = _reference_multitask(
        seg_pred, seg_target, cls_pred, cls_target, log_sigma_seg, log_sigma_cls)
    assert jnp.allclose(out["loss"], ref_total, rtol=1e-4, atol=1e-5), (out["loss"], ref_total)
    assert jnp.allclose(out["segmentation_loss"], ref_seg, rtol=1e-4, atol=1e-5), (out["segmentation_loss"], ref_seg)
    assert jnp.allclose(out["classification_loss"], ref_cls, rtol=1e-4, atol=1e-5), (out["classification_loss"], ref_cls)

    # Multi-step accumulation (tile smaller than S, S a multiple of the tile).
    l1 = jax.block_until_ready(unified_focal_loss(seg_pred, seg_target, tile_s=128))
    r1 = _reference_unified_focal(seg_pred, seg_target)
    assert jnp.allclose(l1, r1, rtol=1e-4, atol=1e-5), (l1, r1)

    # Ragged spatial volume handled as one full-extent block (no padding copy).
    D2, H2, W2 = 3, 5, 7                  # S = 105
    sp2 = jax.random.normal(k3, (1, C, D2, H2, W2), dtype=jnp.float32)
    st2 = jax.random.randint(k4, (1, D2, H2, W2), 0, C, dtype=jnp.int32)
    l2 = jax.block_until_ready(unified_focal_loss(sp2, st2))
    r2 = _reference_unified_focal(sp2, st2)
    assert jnp.allclose(l2, r2, rtol=1e-4, atol=1e-5), (l2, r2)

    # Multi-step with a ragged masked tail (exercises NaN-safe tail masking).
    D3, H3, W3 = 4, 9, 9                  # S = 324 = 2*128 + 68
    sp3 = jax.random.normal(k1, (1, C, D3, H3, W3), dtype=jnp.float32)
    st3 = jax.random.randint(k2, (1, D3, H3, W3), 0, C, dtype=jnp.int32)
    l3 = jax.block_until_ready(unified_focal_loss(sp3, st3, tile_s=128))
    r3 = _reference_unified_focal(sp3, st3)
    assert jnp.allclose(l3, r3, rtol=1e-4, atol=1e-5), (l3, r3)

    print("KERNEL_OK")
</pallas_src>

<mosaic_0001>
module attributes {stable_mosaic.version = 11 : i64} {
  func.func @kernel(%arg0: i32, %arg1: i32, %arg2: memref<1x4x256xf32, #tpu.memory_space<vmem>>, %arg3: memref<1x1x256xi8, #tpu.memory_space<vmem>>, %arg4: memref<1x4x1xf32, #tpu.memory_space<vmem>>, %arg5: memref<1x4x1xf32, #tpu.memory_space<vmem>>, %arg6: memref<1x1x1xf32, #tpu.memory_space<vmem>>) attributes {dimension_semantics = [#tpu.dimension_semantics<parallel>, #tpu.dimension_semantics<arbitrary>], iteration_bounds = array<i64: 2, 1>, scalar_prefetch = 0 : i64, scratch_operands = 0 : i64, tpu.core_type = #tpu.core_type<tc>, window_params = [{transform_indices = @transform_0, window_bounds = array<i64: 1, 4, 256>}, {transform_indices = @transform_1, window_bounds = array<i64: 1, 1, 256>}, {transform_indices = @transform_2, window_bounds = array<i64: 1, 4, 1>}, {transform_indices = @transform_3, window_bounds = array<i64: 1, 4, 1>}, {transform_indices = @transform_4, window_bounds = array<i64: 1, 1, 1>}]} {
    %c0_i32 = arith.constant 0 : i32
    %0 = arith.cmpi eq, %arg1, %c0_i32 : i32
    %1 = arith.extui %0 : i1 to i32
    %c0_i32_0 = arith.constant 0 : i32
    %2 = arith.cmpi ne, %1, %c0_i32_0 : i32
    scf.if %2 {
      %cst_35 = arith.constant 0.000000e+00 : f32
      %66 = vector.broadcast %cst_35 : f32 to vector<1x4x1xf32>
      %c0_36 = arith.constant 0 : index
      %c0_37 = arith.constant 0 : index
      %c0_38 = arith.constant 0 : index
      %67 = vector.load %arg4[%c0_36, %c0_37, %c0_38] : memref<1x4x1xf32, #tpu.memory_space<vmem>>, vector<1x4x1xf32>
      tpu.vector_store %arg4[%c0_36, %c0_37, %c0_38], %66 {strides = array<i32>} : memref<1x4x1xf32, #tpu.memory_space<vmem>>, vector<1x4x1xf32>,
      %cst_39 = arith.constant 0.000000e+00 : f32
      %68 = vector.broadcast %cst_39 : f32 to vector<1x4x1xf32>
      %c0_40 = arith.constant 0 : index
      %c0_41 = arith.constant 0 : index
      %c0_42 = arith.constant 0 : index
      %69 = vector.load %arg5[%c0_40, %c0_41, %c0_42] : memref<1x4x1xf32, #tpu.memory_space<vmem>>, vector<1x4x1xf32>
      tpu.vector_store %arg5[%c0_40, %c0_41, %c0_42], %68 {strides = array<i32>} : memref<1x4x1xf32, #tpu.memory_space<vmem>>, vector<1x4x1xf32>,
      %cst_43 = arith.constant 0.000000e+00 : f32
      %70 = vector.broadcast %cst_43 : f32 to vector<1x1x1xf32>
      %c0_44 = arith.constant 0 : index
      %c0_45 = arith.constant 0 : index
      %c0_46 = arith.constant 0 : index
      %71 = vector.load %arg6[%c0_44, %c0_45, %c0_46] : memref<1x1x1xf32, #tpu.memory_space<vmem>>, vector<1x1x1xf32>
      tpu.vector_store %arg6[%c0_44, %c0_45, %c0_46], %70 {strides = array<i32>} : memref<1x1x1xf32, #tpu.memory_space<vmem>>, vector<1x1x1xf32>,
    } else {
    }
    %c0 = arith.constant 0 : index
    %c0_1 = arith.constant 0 : index
    %c0_2 = arith.constant 0 : index
    %3 = vector.load %arg2[%c0, %c0_1, %c0_2] : memref<1x4x256xf32, #tpu.memory_space<vmem>>, vector<1x4x256xf32>
    %4 = vector.shape_cast %3 : vector<1x4x256xf32> to vector<4x256xf32>
    %c0_3 = arith.constant 0 : index
    %c0_4 = arith.constant 0 : index
    %c0_5 = arith.constant 0 : index
    %5 = vector.load %arg3[%c0_3, %c0_4, %c0_5] : memref<1x1x256xi8, #tpu.memory_space<vmem>>, vector<1x1x256xi8>
    %6 = vector.shape_cast %5 : vector<1x1x256xi8> to vector<1x256xi8>
    %7 = arith.extsi %6 : vector<1x256xi8> to vector<1x256xi32>
    %cst = arith.constant dense<0xFF800000> : vector<256xf32>
    %8 = vector.multi_reduction <maximumf>, %4, %cst [0] : vector<4x256xf32> to vector<256xf32>
    %9 = vector.shape_cast %8 : vector<256xf32> to vector<1x256xf32>
    %10 = vector.broadcast %9 : vector<1x256xf32> to vector<4x256xf32>
    %11 = arith.subf %4, %10 : vector<4x256xf32>
    %12 = math.exp %11 : vector<4x256xf32>
    %cst_6 = arith.constant dense<0.000000e+00> : vector<256xf32>
    %13 = vector.multi_reduction <add>, %12, %cst_6 [0] : vector<4x256xf32> to vector<256xf32>
    %14 = vector.shape_cast %13 : vector<256xf32> to vector<1x256xf32>
    %15 = tpu.reciprocal %14 {approx = true} : vector<1x256xf32> -> vector<1x256xf32>
    %16 = arith.mulf %14, %15 : vector<1x256xf32>
    %cst_7 = arith.constant 2.000000e+00 : f32
    %17 = vector.broadcast %cst_7 : f32 to vector<1x256xf32>
    %18 = arith.subf %17, %16 : vector<1x256xf32>
    %19 = arith.mulf %15, %18 : vector<1x256xf32>
    %20 = vector.broadcast %19 : vector<1x256xf32> to vector<4x256xf32>
    %21 = arith.mulf %12, %20 : vector<4x256xf32>
    %22 = tpu.iota {dimensions = array<i32: 0>} : vector<4x256xi32>
    %23 = vector.broadcast %7 : vector<1x256xi32> to vector<4x256xi32>
    %24 = arith.cmpi eq, %22, %23 : vector<4x256xi32>
    %25 = arith.extui %24 : vector<4x256xi1> to vector<4x256xi32>
    %26 = arith.sitofp %25 : vector<4x256xi32> to vector<4x256xf32>
    %27 = arith.mulf %21, %26 : vector<4x256xf32>
    %28 = arith.mulf %4, %26 : vector<4x256xf32>
    %cst_8 = arith.constant dense<0.000000e+00> : vector<256xf32>
    %29 = vector.multi_reduction <add>, %28, %cst_8 [0] : vector<4x256xf32> to vector<256xf32>
    %30 = vector.shape_cast %29 : vector<256xf32> to vector<1x256xf32>
    %31 = math.log %14 : vector<1x256xf32>
    %32 = arith.addf %9, %31 : vector<1x256xf32>
    %33 = arith.subf %32, %30 : vector<1x256xf32>
    %cst_9 = arith.constant dense<0.000000e+00> : vector<256xf32>
    %34 = vector.multi_reduction <add>, %27, %cst_9 [0] : vector<4x256xf32> to vector<256xf32>
    %35 = vector.shape_cast %34 : vector<256xf32> to vector<1x256xf32>
    %36 = arith.mulf %21, %21 : vector<4x256xf32>
    %cst_10 = arith.constant dense<0.000000e+00> : vector<256xf32>
    %37 = vector.multi_reduction <add>, %36, %cst_10 [0] : vector<4x256xf32> to vector<256xf32>
    %38 = vector.shape_cast %37 : vector<256xf32> to vector<1x256xf32>
    %cst_11 = arith.constant 2.000000e+00 : f32
    %39 = vector.broadcast %cst_11 : f32 to vector<1x256xf32>
    %40 = arith.mulf %39, %35 : vector<1x256xf32>
    %cst_12 = arith.constant 1.000000e+00 : f32
    %41 = vector.broadcast %cst_12 : f32 to vector<1x256xf32>
    %42 = arith.subf %41, %40 : vector<1x256xf32>
    %43 = arith.addf %42, %38 : vector<1x256xf32>
    %cst_13 = arith.constant 2.500000e-01 : f32
    %44 = vector.broadcast %cst_13 : f32 to vector<1x256xf32>
    %45 = arith.mulf %43, %44 : vector<1x256xf32>
    %46 = arith.mulf %45, %33 : vector<1x256xf32>
    %c0_14 = arith.constant 0 : index
    %c0_15 = arith.constant 0 : index
    %c0_16 = arith.constant 0 : index
    %47 = vector.load %arg4[%c0_14, %c0_15, %c0_16] : memref<1x4x1xf32, #tpu.memory_space<vmem>>, vector<1x4x1xf32>
    %cst_17 = arith.constant dense<0.000000e+00> : vector<4xf32>
    %48 = vector.multi_reduction <add>, %27, %cst_17 [1] : vector<4x256xf32> to vector<4xf32>
    %49 = vector.shape_cast %48 : vector<4xf32> to vector<4x1xf32>
    %50 = vector.shape_cast %49 : vector<4x1xf32> to vector<1x4x1xf32>
    %51 = arith.addf %47, %50 : vector<1x4x1xf32>
    %c0_18 = arith.constant 0 : index
    %c0_19 = arith.constant 0 : index
    %c0_20 = arith.constant 0 : index
    %52 = vector.load %arg4[%c0_18, %c0_19, %c0_20] : memref<1x4x1xf32, #tpu.memory_space<vmem>>, vector<1x4x1xf32>
    tpu.vector_store %arg4[%c0_18, %c0_19, %c0_20], %51 {strides = array<i32>} : memref<1x4x1xf32, #tpu.memory_space<vmem>>, vector<1x4x1xf32>,
    %c0_21 = arith.constant 0 : index
    %c0_22 = arith.constant 0 : index
    %c0_23 = arith.constant 0 : index
    %53 = vector.load %arg5[%c0_21, %c0_22, %c0_23] : memref<1x4x1xf32, #tpu.memory_space<vmem>>, vector<1x4x1xf32>
    %54 = arith.addf %21, %26 : vector<4x256xf32>
    %cst_24 = arith.constant dense<0.000000e+00> : vector<4xf32>
    %55 = vector.multi_reduction <add>, %54, %cst_24 [1] : vector<4x256xf32> to vector<4xf32>
    %56 = vector.shape_cast %55 : vector<4xf32> to vector<4x1xf32>
    %57 = vector.shape_cast %56 : vector<4x1xf32> to vector<1x4x1xf32>
    %58 = arith.addf %53, %57 : vector<1x4x1xf32>
    %c0_25 = arith.constant 0 : index
    %c0_26 = arith.constant 0 : index
    %c0_27 = arith.constant 0 : index
    %59 = vector.load %arg5[%c0_25, %c0_26, %c0_27] : memref<1x4x1xf32, #tpu.memory_space<vmem>>, vector<1x4x1xf32>
    tpu.vector_store %arg5[%c0_25, %c0_26, %c0_27], %58 {strides = array<i32>} : memref<1x4x1xf32, #tpu.memory_space<vmem>>, vector<1x4x1xf32>,
    %c0_28 = arith.constant 0 : index
    %c0_29 = arith.constant 0 : index
    %c0_30 = arith.constant 0 : index
    %60 = vector.load %arg6[%c0_28, %c0_29, %c0_30] : memref<1x1x1xf32, #tpu.memory_space<vmem>>, vector<1x1x1xf32>
    %cst_31 = arith.constant dense<0.000000e+00> : vector<1xf32>
    %61 = vector.multi_reduction <add>, %46, %cst_31 [1] : vector<1x256xf32> to vector<1xf32>
    %62 = vector.shape_cast %61 : vector<1xf32> to vector<1x1xf32>
    %63 = vector.shape_cast %62 : vector<1x1xf32> to vector<1x1x1xf32>
    %64 = arith.addf %60, %63 : vector<1x1x1xf32>
    %c0_32 = arith.constant 0 : index
    %c0_33 = arith.constant 0 : index
    %c0_34 = arith.constant 0 : index
    %65 = vector.load %arg6[%c0_32, %c0_33, %c0_34] : memref<1x1x1xf32, #tpu.memory_space<vmem>>, vector<1x1x1xf32>
    tpu.vector_store %arg6[%c0_32, %c0_33, %c0_34], %64 {strides = array<i32>} : memref<1x1x1xf32, #tpu.memory_space<vmem>>, vector<1x1x1xf32>,
    return
  }
  func.func @transform_0(%arg0: i32, %arg1: i32) -> (i32, i32, i32) {
    %c0_i32 = arith.constant 0 : i32
    %c0_i32_0 = arith.constant 0 : i32
    return %arg0, %c0_i32, %arg1 : i32, i32, i32
  }
  func.func @transform_1(%arg0: i32, %arg1: i32) -> (i32, i32, i32) {
    %c0_i32 = arith.constant 0 : i32
    %c0_i32_0 = arith.constant 0 : i32
    return %arg0, %c0_i32, %arg1 : i32, i32, i32
  }
  func.func @transform_2(%arg0: i32, %arg1: i32) -> (i32, i32, i32) {
    %c0_i32 = arith.constant 0 : i32
    %c0_i32_0 = arith.constant 0 : i32
    %c0_i32_1 = arith.constant 0 : i32
    return %arg0, %c0_i32, %c0_i32_0 : i32, i32, i32
  }
  func.func @transform_3(%arg0: i32, %arg1: i32) -> (i32, i32, i32) {
    %c0_i32 = arith.constant 0 : i32
    %c0_i32_0 = arith.constant 0 : i32
    %c0_i32_1 = arith.constant 0 : i32
    return %arg0, %c0_i32, %c0_i32_0 : i32, i32, i32
  }
  func.func @transform_4(%arg0: i32, %arg1: i32) -> (i32, i32, i32) {
    %c0_i32 = arith.constant 0 : i32
    %c0_i32_0 = arith.constant 0 : i32
    %c0_i32_1 = arith.constant 0 : i32
    return %arg0, %c0_i32, %c0_i32_0 : i32, i32, i32
  }
}

</mosaic_0001>

<llo_original>
// kernel: tpu_custom_call.1
$region0: #{tpu_custom_call.1}
  #allocation0 [shape = 'u32[]', space=smem, size = 0x4, offset = 0x4, fixed_abs, tag = 'smem constant byte address 0x4 - core index']
  #allocation1 [shape = 'u32[72,128]{1,0:T(1,128)}', space=vmem, size = 0x9000, scoped, tag = 'internal scratch']
  %s0 = inlined_call_operand.hbm [shape: f32[2,4,256], index: 0, kind: input, shape index: {}]
  %s1 = inlined_call_operand.vmem [shape: s8[2,1,256], index: 1, kind: input, shape index: {}]
  %s2 = inlined_call_operand.vmem [shape: f32[2,4,1], index: 2, kind: output, shape index: {0}]
  %s3 = inlined_call_operand.vmem [shape: f32[2,4,1], index: 3, kind: output, shape index: {1}]
  %s4 = inlined_call_operand.vmem [shape: f32[2,1,1], index: 4, kind: output, shape index: {2}]
  %5 = xla_tuple %s2, %s3, %s4
  %s6 = sld [smem:[#allocation0]]
  $region65: #{tpu_custom_call.1} parent=0
    _
  %s8 = ssub.s32 1, %s6
  %s9 = scalar_select 0, %s8, %s6
  $region1: #{tpu_custom_call.1} parent=0
    #allocation2 [shape = 'u8[8192]{0}', space=vmem, size = 0x2000, scoped, tag = 'input window, operand 0']
    #allocation3 [shape = 's32[2]{0}', space=sflag, size = 0x8, scoped, tag = 'scoped memory for tpu_custom_call.1']
    %10 = vsyncpa [#allocation3], 0
    %s11 = scalar_lea.sflag [#allocation3], 1
    %12 = vsyncpa %s11, 0
    loop: start=0, step=1, limit=4
    $region2: #{tpu_custom_call.1} parent=1 // loop_pre_header
      _
    $region3: #{tpu_custom_call.1} parent=1 // loop_header
      %s14 = sphi 0, %s18
      %p15 = scmp.ge.s32.totalorder %s14, 4
      %s21 = sphi 0, %s33
      %s22 = sphi 0, %s29
      %s23 = sphi 0, %s21
      %s24 = sphi 0, %s22
      %s25 = sphi 0, %s23
      %s26 = sphi 0, %s24
      %s38 = sphi 0, %s40
      %s41 = sphi 0, %s38
      %s42 = sphi 0, %s41
      %s58 = sphi 0, %s42
      %s66 = sphi 0, %s68
      %s69 = sphi 0, %s66
      %s70 = sphi 0, %s69
      %s86 = sphi 0, %s70
      %s92 = sphi 0, %s94
      %s95 = sphi 0, %s92
      %s96 = sphi 0, %s95
      %s112 = sphi 0, %s96
      %s118 = sphi 0, %s120
      %s121 = sphi 0, %s118
      %s122 = sphi 0, %s121
      %s138 = sphi 0, %s122
      %s144 = sphi 0, %s146
      %s147 = sphi 0, %s144
      %s148 = sphi 0, %s147
      %s164 = sphi 0, %s148
    $region4: #{tpu_custom_call.1} parent=1 // loop_header_branch
      %17 = sbr.rel (%p15) target = $region8
    $region5: #{tpu_custom_call.1} parent=1 // loop_body
      %s19 = ssub.s32 %s14, 1
      %s20 = ssub.s32 %s14, 2
      %s27 = sadd.s32 1, %s22
      %p28 = scmp.ge.s32.totalorder %s27, 1
      %s29 = scalar_select %p28, 0, %s27
      %s30 = sadd.s32 1, %s21
      %s31 = scalar_select %p28, %s30, %s21
      %p32 = scmp.ge.s32.totalorder %s31, 2
      %s33 = scalar_select %p32, 0, %s31
      %s34 = ssub.s32 %s21, %s33
      %s35 = ssub.s32 %s22, %s29
      %s36 = sor.u32 %s34, %s35
      %p37 = scmp.eq.s32.totalorder %s36, 0
      %s39 = sadd.s32 %s38, 1
      %s40 = scalar_select %p37, %s38, %s39
      %p43 = pneg %p37
      %p44 = scmp.eq.s32.totalorder %s14, 1
      %p45 = por %p43, %p44
      %p46 = scmp.ne.s32.totalorder %s38, %s41
      %p47 = scmp.eq.s32.totalorder %s14, 0
      %p48 = por %p46, %p47
      %p49 = scmp.ne.s32.totalorder %s38, %s41
      %p50 = scmp.eq.s32.totalorder %s19, 1
      %p51 = por %p49, %p50
      %p52 = scmp.ne.s32.totalorder %s41, %s42
      %p53 = scmp.eq.s32.totalorder %s19, 0
      %p54 = por %p52, %p53
      %p55 = scmp.ne.s32.totalorder %s41, %s42
      %p56 = scmp.eq.s32.totalorder %s20, 1
      %p57 = por %p55, %p56
      %p59 = scmp.ne.s32.totalorder %s42, %s58
      %p60 = scmp.eq.s32.totalorder %s20, 0
      %p61 = por %p59, %p60
      %s62 = ssub.s32 %s21, %s33
      %s63 = ssub.s32 %s22, %s29
      %s64 = sor.u32 %s62, %s63
      %p65 = scmp.eq.s32.totalorder %s64, 0
      %s67 = sadd.s32 %s66, 1
      %s68 = scalar_select %p65, %s66, %s67
      %p71 = pneg %p65
      %p72 = scmp.eq.s32.totalorder %s14, 1
      %p73 = por %p71, %p72
      %p74 = scmp.ne.s32.totalorder %s66, %s69
      %p75 = scmp.eq.s32.totalorder %s14, 0
      %p76 = por %p74, %p75
      %p77 = scmp.ne.s32.totalorder %s66, %s69
      %p78 = scmp.eq.s32.totalorder %s19, 1
      %p79 = por %p77, %p78
      %p80 = scmp.ne.s32.totalorder %s69, %s70
      %p81 = scmp.eq.s32.totalorder %s19, 0
      %p82 = por %p80, %p81
      %p83 = scmp.ne.s32.totalorder %s69, %s70
      %p84 = scmp.eq.s32.totalorder %s20, 1
      %p85 = por %p83, %p84
      %p87 = scmp.ne.s32.totalorder %s70, %s86
      %p88 = scmp.eq.s32.totalorder %s20, 0
      %p89 = por %p87, %p88
      %s90 = ssub.s32 %s21, %s33
      %p91 = scmp.eq.s32.totalorder %s90, 0
      %s93 = sadd.s32 %s92, 1
      %s94 = scalar_select %p91, %s92, %s93
      %p97 = pneg %p91
      %p98 = scmp.eq.s32.totalorder %s14, 1
      %p99 = por %p97, %p98
      %p100 = scmp.ne.s32.totalorder %s92, %s95
      %p101 = scmp.eq.s32.totalorder %s14, 0
      %p102 = por %p100, %p101
      %p103 = scmp.ne.s32.totalorder %s92, %s95
      %p104 = scmp.eq.s32.totalorder %s19, 1
      %p105 = por %p103, %p104
      %p106 = scmp.ne.s32.totalorder %s95, %s96
      %p107 = scmp.eq.s32.totalorder %s19, 0
      %p108 = por %p106, %p107
      %p109 = scmp.ne.s32.totalorder %s95, %s96
      %p110 = scmp.eq.s32.totalorder %s20, 1
      %p111 = por %p109, %p110
      %p113 = scmp.ne.s32.totalorder %s96, %s112
      %p114 = scmp.eq.s32.totalorder %s20, 0
      %p115 = por %p113, %p114
      %s116 = ssub.s32 %s21, %s33
      %p117 = scmp.eq.s32.totalorder %s116, 0
      %s119 = sadd.s32 %s118, 1
      %s120 = scalar_select %p117, %s118, %s119
      %p123 = pneg %p117
      %p124 = scmp.eq.s32.totalorder %s14, 1
      %p125 = por %p123, %p124
      %p126 = scmp.ne.s32.totalorder %s118, %s121
      %p127 = scmp.eq.s32.totalorder %s14, 0
      %p128 = por %p126, %p127
      %p129 = scmp.ne.s32.totalorder %s118, %s121
      %p130 = scmp.eq.s32.totalorder %s19, 1
      %p131 = por %p129, %p130
      %p132 = scmp.ne.s32.totalorder %s121, %s122
      %p133 = scmp.eq.s32.totalorder %s19, 0
      %p134 = por %p132, %p133
      %p135 = scmp.ne.s32.totalorder %s121, %s122
      %p136 = scmp.eq.s32.totalorder %s20, 1
      %p137 = por %p135, %p136
      %p139 = scmp.ne.s32.totalorder %s122, %s138
      %p140 = scmp.eq.s32.totalorder %s20, 0
      %p141 = por %p139, %p140
      %s142 = ssub.s32 %s21, %s33
      %p143 = scmp.eq.s32.totalorder %s142, 0
      %s145 = sadd.s32 %s144, 1
      %s146 = scalar_select %p143, %s144, %s145
      %p149 = pneg %p143
      %p150 = scmp.eq.s32.totalorder %s14, 1
      %p151 = por %p149, %p150
      %p152 = scmp.ne.s32.totalorder %s144, %s147
      %p153 = scmp.eq.s32.totalorder %s14, 0
      %p154 = por %p152, %p153
      %p155 = scmp.ne.s32.totalorder %s144, %s147
      %p156 = scmp.eq.s32.totalorder %s19, 1
      %p157 = por %p155, %p156
      %p158 = scmp.ne.s32.totalorder %s147, %s148
      %p159 = scmp.eq.s32.totalorder %s19, 0
      %p160 = por %p158, %p159
      %p161 = scmp.ne.s32.totalorder %s147, %s148
      %p162 = scmp.eq.s32.totalorder %s20, 1
      %p163 = por %p161, %p162
      %p165 = scmp.ne.s32.totalorder %s148, %s164
      %p166 = scmp.eq.s32.totalorder %s20, 0
      %p167 = por %p165, %p166
      %p168 = scmp.le.s32.totalorder 1, %s14
      %p169 = scmp.lt.s32.totalorder %s14, 3
      %p170 = pnand %p168, %p169
      %p171 = pneg %p170
      // Predicated region
      $region9: #{tpu_custom_call.1} parent=5 // pred_check
        _
      $region10: #{tpu_custom_call.1} parent=5 // pred_check_branch
        %173 = sbr.rel (%p170) target = $region12
      $region11: #{tpu_custom_call.1} parent=5 // pred_region
        %s174 = ssub.s32 %s14, 1
      $region12: #{tpu_custom_call.1} parent=5 // pred_fallthru
        _
      %p175 = scmp.lt.s32.totalorder %s14, 2
      // Predicated region
      $region13: #{tpu_custom_call.1} parent=5 // pred_check
        %p176 = pneg %p175
      $region14: #{tpu_custom_call.1} parent=5 // pred_check_branch
        %178 = sbr.rel (%p176) target = $region16
      $region15: #{tpu_custom_call.1} parent=5 // pred_region
        // Predicated region
        $region17: #{tpu_custom_call.1} parent=15 // pred_check
          %p179 = pneg %p48
        $region18: #{tpu_custom_call.1} parent=15 // pred_check_branch
          %181 = sbr.rel (%p179) target = $region20
        $region19: #{tpu_custom_call.1} parent=15 // pred_region
          %s182 = sand.u32 %s38, 1
          %s183 = scalar_lea.sflag [#allocation3], %s182
          %s184 = sand.u32 %s38, 1
          %s185 = smul.addr %s184, 8
          %s186 = scalar_lea.vmem [#allocation2], %s185
          %s187 = smul.u32 2, %s22
          %189 = vsyncadd %s183, 0
          %s190 = smul.addr %s21, 2
          %s191 = sadd.s32 %s187, %s190
          %s192 = smul.addr %s191, 4
          %s193 = scalar_lea.hbm %s0, %s192
          %s195 = sshll.u32 %s193, 4
          %s196 = int_to_ptr.hbm [resolvable:$true] %s195
          %s197 = sshll.u32 %s186, 4
          %s198 = int_to_ptr.vmem [resolvable:$true] %s197
          %200 = dma.hbm_to_vmem [thread:$0]  %s196, 128, %s198, %s183
        $region20: #{tpu_custom_call.1} parent=15 // pred_fallthru
          _
        // Predicated region
        $region21: #{tpu_custom_call.1} parent=15 // pred_check
          %p201 = pneg %p76
        $region22: #{tpu_custom_call.1} parent=15 // pred_check_branch
          %203 = sbr.rel (%p201) target = $region24
        $region23: #{tpu_custom_call.1} parent=15 // pred_region
          %s204 = smul.u32 2, %s22
          %p205 = scmp.lt.s32.totalorder %s21, 1
          %s206 = scalar_select %p205, %s21, 1
          %p207 = scmp.lt.s32.totalorder %s204, 1
          %s208 = scalar_select %p207, %s204, 1
          %s209 = smul.addr %s206, 2
          %s210 = sadd.s32 %s208, %s209
          %s211 = scalar_lea.vmem %s1, %s210
          %s212 = smul.u32 2, %s22
        $region24: #{tpu_custom_call.1} parent=15 // pred_fallthru
          _
      $region16: #{tpu_custom_call.1} parent=5 // pred_fallthru
        _
      %p213 = scmp.le.s32.totalorder 1, %s14
      %p214 = scmp.lt.s32.totalorder %s14, 3
      %p215 = pnand %p213, %p214
      %p216 = pneg %p215
      // Predicated region
      $region25: #{tpu_custom_call.1} parent=5 // pred_check
        _
      $region26: #{tpu_custom_call.1} parent=5 // pred_check_branch
        %218 = sbr.rel (%p215) target = $region28
      $region27: #{tpu_custom_call.1} parent=5 // pred_region
        %s219 = ssub.s32 %s14, 1
        %s220 = sand.u32 %s41, 1
        %s221 = scalar_lea.sflag [#allocation3], %s220
        %s222 = sand.u32 %s41, 1
        %s223 = smul.addr %s222, 8
        %s224 = scalar_lea.vmem [#allocation2], %s223
        // Predicated region
        $region29: #{tpu_custom_call.1} parent=27 // pred_check
          %p225 = pneg %p54
        $region30: #{tpu_custom_call.1} parent=27 // pred_check_branch
          %227 = sbr.rel (%p225) target = $region32
        $region31: #{tpu_custom_call.1} parent=27 // pred_region
          %229 = dma.done %s221, 128
        $region32: #{tpu_custom_call.1} parent=27 // pred_fallthru
          _
        %s230 = sand.u32 %s41, 1
        %s231 = scalar_lea.sflag [#allocation3], %s230
        %s232 = sand.u32 %s41, 1
        %s233 = smul.addr %s232, 8
        %s234 = scalar_lea.vmem [#allocation2], %s233
        %p235 = pneg %p54
        %p236 = pneg %p51
        %s237 = smul.u32 2, %s24
        %p238 = scmp.lt.s32.totalorder %s23, 1
        %s239 = scalar_select %p238, %s23, 1
        %p240 = scmp.lt.s32.totalorder %s237, 1
        %s241 = scalar_select %p240, %s237, 1
        %s242 = smul.addr %s239, 2
        %s243 = sadd.s32 %s241, %s242
        %s244 = scalar_lea.vmem %s1, %s243
        %p245 = pneg %p82
        %p246 = pneg %p79
        %p247 = pneg %p108
        %p248 = pneg %p105
        %p249 = scmp.lt.s32.totalorder %s23, 1
        %s250 = scalar_select %p249, %s23, 1
        %s251 = smul.addr %s250, 4
        %s252 = scalar_lea.vmem %s2, %s251
        %p253 = pneg %p134
        %p254 = pneg %p131
        %p255 = scmp.lt.s32.totalorder %s23, 1
        %s256 = scalar_select %p255, %s23, 1
        %s257 = smul.addr %s256, 4
        %s258 = scalar_lea.vmem %s3, %s257
        %p259 = pneg %p160
        %p260 = pneg %p157
        %p261 = scmp.lt.s32.totalorder %s23, 1
        %s262 = scalar_select %p261, %s23, 1
        %s263 = scalar_lea.vmem %s4, %s262
        %s264 = smul.u32 2, %s24
        %s265 = smul.u32 2, %s24
        %p266 = scmp.lt.s32.totalorder %s23, 1
        %s267 = scalar_select %p266, %s23, 1
        %p268 = scmp.lt.s32.totalorder %s265, 1
        %s269 = scalar_select %p268, %s265, 1
        %s270 = smul.addr %s267, 2
        %s271 = sadd.s32 %s269, %s270
        %s272 = scalar_lea.vmem %s1, %s271
        %s273 = smul.u32 2, %s24
        %p274 = scmp.lt.s32.totalorder %s23, 1
        %s275 = scalar_select %p274, %s23, 1
        %s276 = smul.addr %s275, 4
        %s277 = scalar_lea.vmem %s2, %s276
        %p278 = scmp.lt.s32.totalorder %s23, 1
        %s279 = scalar_select %p278, %s23, 1
        %s280 = smul.addr %s279, 4
        %s281 = scalar_lea.vmem %s3, %s280
        %p282 = scmp.lt.s32.totalorder %s23, 1
        %s283 = scalar_select %p282, %s23, 1
        %s284 = scalar_lea.vmem %s4, %s283
        %p285 = scmp.eq.s32.totalorder %s24, 0
        // Predicated region
        $region33: #{tpu_custom_call.1} parent=27 // pred_check
          %p286 = pneg %p285
        $region34: #{tpu_custom_call.1} parent=27 // pred_check_branch
          %288 = sbr.rel (%p286) target = $region36
        $region35: #{tpu_custom_call.1} parent=27 // pred_region
          %vm289 = vcmask 3072
          %290 = vst.msk [vmem:[%s277] sm:$0xf] %vm289, 0.0
          %291 = vst.msk [vmem:[%s281] sm:$0xf] %vm289, 0.0
          %vm292 = vcmask 0
          %293 = vst.msk [vmem:[%s284] sm:$0x1] %vm292, 0.0
        $region36: #{tpu_custom_call.1} parent=27 // pred_fallthru
          _
        %v294 = vld [vmem:[%s224] sm:$0xff]
        %v295 = vld [vmem:[%s272] sm:$0x3]
        %v296 = vunpack.c.0.s8 %v295
        %298 = vst [vmem:[#allocation1] ss:$2 sm:$0xff] %v294
        %v299 = vld.sshfl [vmem:[#allocation1] sm:$0xff pattern:$0x75316420]
        %v300 = vld.sshfl [vmem:[#allocation1 + $0x8] sm:$0xff pattern:$0x75316420]
        %vm303 = vcmask 1043456
        %v304 = vsel %vm303, %v299, -inf
        %v305 = vrot.slane %v304, 4
        %v306 = vmax.f32 %v304, %v305
        %v307 = vrot.slane %v306, 2
        %v308 = vmax.f32 %v306, %v307
        %v309 = vrot.slane %v308, 1
        %v310 = vmax.f32 %v308, %v309
        %v311 = vsel %vm303, %v300, -inf
        %v312 = vrot.slane %v311, 4
        %v313 = vmax.f32 %v311, %v312
        %v314 = vrot.slane %v313, 2
        %v315 = vmax.f32 %v313, %v314
        %v316 = vrot.slane %v315, 1
        %v317 = vmax.f32 %v315, %v316
        %v320 = vrot.slane %v317, 4
        %v321 = vsel %vm303, %v310, %v320
        %v323 = vsub.f32 %v294, %v321
        %v324 = vmul.f32 %v323, 1.442695
        %v325 = vpow.pop %v324
        %327 = vst [vmem:[#allocation1] ss:$2 sm:$0xff] %v325
        %v328 = vld.sshfl [vmem:[#allocation1] sm:$0xff pattern:$0x75316420]
        %v329 = vld.sshfl [vmem:[#allocation1 + $0x8] sm:$0xff pattern:$0x75316420]
        %v332 = vsel %vm303, %v328, 0.0
        %v333 = vrot.slane %v332, 4
        %v334 = vadd.f32 %v332, %v333
        %v335 = vrot.slane %v334, 2
        %v336 = vadd.f32 %v334, %v335
        %v337 = vrot.slane %v336, 1
        %v338 = vadd.f32 %v336, %v337
        %v339 = vsel %vm303, %v329, 0.0
        %v340 = vrot.slane %v339, 4
        %v341 = vadd.f32 %v339, %v340
        %v342 = vrot.slane %v341, 2
        %v343 = vadd.f32 %v341, %v342
        %v344 = vrot.slane %v343, 1
        %v345 = vadd.f32 %v343, %v344
        %v346 = vrcp.pop %v338
        %v347 = vrcp.pop %v345
        %v348 = vmul.f32 %v338, %v346
        %v349 = vmul.f32 %v345, %v347
        %v350 = vsub.f32 2.0, %v348
        %v351 = vsub.f32 2.0, %v349
        %v352 = vmul.f32 %v346, %v350
        %v353 = vmul.f32 %v347, %v351
        %v356 = vrot.slane %v353, 4
        %v357 = vsel %vm303, %v352, %v356
        %v359 = vmul.f32 %v325, %v357
        %v360 = vlaneseq
        %v361 = vshrl.u32 %v360, 7
        %v362 = vperm.slane %v296, 0
        %v363 = vperm.slane %v296, 4
        %v364 = vperm.slane %v362, 0
        %v365 = vperm.slane %v363, 0
        %vm366 = vcmp.eq.s32.totalorder %v361, %v364
        %vm367 = vcmp.eq.s32.totalorder %v361, %v365
        %v368 = vsel %vm366, 1, 0
        %v369 = vsel %vm367, 1, 0
        %v370 = vcvt.s32.f32 %v368
        %v371 = vcvt.s32.f32 %v369
        %v374 = vrot.slane %v371, 4
        %v375 = vsel %vm303, %v370, %v374
        %v377 = vmul.f32 %v359, %v375
        %v378 = vmul.f32 %v294, %v375
        %380 = vst [vmem:[#allocation1] ss:$2 sm:$0xff] %v378
        %v381 = vld.sshfl [vmem:[#allocation1] sm:$0xff pattern:$0x75316420]
        %v382 = vld.sshfl [vmem:[#allocation1 + $0x8] sm:$0xff pattern:$0x75316420]
        %v385 = vsel %vm303, %v381, 0.0
        %v386 = vrot.slane %v385, 4
        %v387 = vadd.f32 %v385, %v386
        %v388 = vrot.slane %v387, 2
        %v389 = vadd.f32 %v387, %v388
        %v390 = vrot.slane %v389, 1
        %v391 = vadd.f32 %v389, %v390
        %v392 = vsel %vm303, %v382, 0.0
        %v393 = vrot.slane %v392, 4
        %v394 = vadd.f32 %v392, %v393
        %v395 = vrot.slane %v394, 2
        %v396 = vadd.f32 %v394, %v395
        %v397 = vrot.slane %v396, 1
        %v398 = vadd.f32 %v396, %v397
        %v399 = vlog2.pop %v338
        %v400 = vmul.f32 %v399, 0.6931472
        %v401 = vlog2.pop %v345
        %v402 = vmul.f32 %v401, 0.6931472
        %v403 = vadd.f32 %v310, %v400
        %v404 = vadd.f32 %v317, %v402
        %v405 = vsub.f32 %v403, %v391
        %v406 = vsub.f32 %v404, %v398
        %408 = vst [vmem:[#allocation1] ss:$2 sm:$0xff] %v377
        %v409 = vld.sshfl [vmem:[#allocation1] sm:$0xff pattern:$0x75316420]
        %v410 = vld.sshfl [vmem:[#allocation1 + $0x8] sm:$0xff pattern:$0x75316420]
        %v413 = vsel %vm303, %v409, 0.0
        %v414 = vrot.slane %v413, 4
        %v415 = vadd.f32 %v413, %v414
        %v416 = vrot.slane %v415, 2
        %v417 = vadd.f32 %v415, %v416
        %v418 = vrot.slane %v417, 1
        %v419 = vadd.f32 %v417, %v418
        %v420 = vsel %vm303, %v410, 0.0
        %v421 = vrot.slane %v420, 4
        %v422 = vadd.f32 %v420, %v421
        %v423 = vrot.slane %v422, 2
        %v424 = vadd.f32 %v422, %v423
        %v425 = vrot.slane %v424, 1
        %v426 = vadd.f32 %v424, %v425
        %v427 = vmul.f32 %v359, %v359
        %429 = vst [vmem:[#allocation1] ss:$2 sm:$0xff] %v427
        %v430 = vld.sshfl [vmem:[#allocation1] sm:$0xff pattern:$0x75316420]
        %v431 = vld.sshfl [vmem:[#allocation1 + $0x8] sm:$0xff pattern:$0x75316420]
        %v434 = vsel %vm303, %v430, 0.0
        %v435 = vrot.slane %v434, 4
        %v436 = vadd.f32 %v434, %v435
        %v437 = vrot.slane %v436, 2
        %v438 = vadd.f32 %v436, %v437
        %v439 = vrot.slane %v438, 1
        %v440 = vadd.f32 %v438, %v439
        %v441 = vsel %vm303, %v431, 0.0
        %v442 = vrot.slane %v441, 4
        %v443 = vadd.f32 %v441, %v442
        %v444 = vrot.slane %v443, 2
        %v445 = vadd.f32 %v443, %v444
        %v446 = vrot.slane %v445, 1
        %v447 = vadd.f32 %v445, %v446
        %v448 = vmul.f32 %v419, 2.0
        %v449 = vmul.f32 %v426, 2.0
        %v450 = vsub.f32 1.0, %v448
        %v451 = vsub.f32 1.0, %v449
        %v452 = vadd.f32 %v450, %v440
        %v453 = vadd.f32 %v451, %v447
        %v454 = vmul.f32 %v452, 0.25
        %v455 = vmul.f32 %v453, 0.25
        %v456 = vmul.f32 %v454, %v405
        %v457 = vmul.f32 %v455, %v406
        %v458 = vld [vmem:[%s277] sm:$0xf]
        %459 = vst [vmem:[#allocation1] ss:$2 sm:$0xff] %v377
        %v460 = vld.sshfl [vmem:[#allocation1] sm:$0xff pattern:$0x75316420]
        %v461 = vld.sshfl [vmem:[#allocation1 + $0x8] sm:$0xff pattern:$0x75316420]
        %v464 = vsel %vm303, %v460, 0.0
        %v465 = vsel %vm303, %v461, 0.0
        %v466 = vadd.f32 %v464, %v465
        %467 = vadd.xlane.f32.xlu0 %v466
        %v468 = vpop.xlane.xlu0 %467
        %v469 = vadd.f32 %v458, %v468
        %vm470 = vcmask 3072
        %471 = vst.msk [vmem:[%s277] sm:$0xf] %vm470, %v469
        %v472 = vld [vmem:[%s281] sm:$0xf]
        %v473 = vadd.f32 %v359, %v375
        %475 = vst [vmem:[#allocation1] ss:$2 sm:$0xff] %v473
        %v476 = vld.sshfl [vmem:[#allocation1] sm:$0xff pattern:$0x75316420]
        %v477 = vld.sshfl [vmem:[#allocation1 + $0x8] sm:$0xff pattern:$0x75316420]
        %v480 = vsel %vm303, %v476, 0.0
        %v481 = vsel %vm303, %v477, 0.0
        %v482 = vadd.f32 %v480, %v481
        %483 = vadd.xlane.f32.xlu0 %v482
        %v484 = vpop.xlane.xlu0 %483
        %v485 = vadd.f32 %v472, %v484
        %486 = vst.msk [vmem:[%s281] sm:$0xf] %vm470, %v485
        %v487 = vld [vmem:[%s284] sm:$0x1]
        %v488 = vadd.f32 %v456, %v457
        %489 = vadd.xlane.f32.xlu0 %v488
        %v490 = vpop.xlane.xlu0 %489
        %v491 = vadd.f32 %v487, %v490
        %vm492 = vcmask 0
        %493 = vst.msk [vmem:[%s284] sm:$0x1] %vm492, %v491
        %p494 = scmp.lt.s32.totalorder %s23, 1
        %s495 = scalar_select %p494, %s23, 1
        %s496 = smul.addr %s495, 4
        %s497 = scalar_lea.vmem %s2, %s496
        %p498 = scmp.lt.s32.totalorder %s23, 1
        %s499 = scalar_select %p498, %s23, 1
        %s500 = smul.addr %s499, 4
        %s501 = scalar_lea.vmem %s3, %s500
        %p502 = scmp.lt.s32.totalorder %s23, 1
        %s503 = scalar_select %p502, %s23, 1
        %s504 = scalar_lea.vmem %s4, %s503
        // Predicated region
        $region37: #{tpu_custom_call.1} parent=27 // pred_check
          %p505 = pneg %p105
        $region38: #{tpu_custom_call.1} parent=27 // pred_check_branch
          %507 = sbr.rel (%p505) target = $region40
        $region39: #{tpu_custom_call.1} parent=27 // pred_region
          _
        $region40: #{tpu_custom_call.1} parent=27 // pred_fallthru
          _
        // Predicated region
        $region41: #{tpu_custom_call.1} parent=27 // pred_check
          %p508 = pneg %p131
        $region42: #{tpu_custom_call.1} parent=27 // pred_check_branch
          %510 = sbr.rel (%p508) target = $region44
        $region43: #{tpu_custom_call.1} parent=27 // pred_region
          _
        $region44: #{tpu_custom_call.1} parent=27 // pred_fallthru
          _
        // Predicated region
        $region45: #{tpu_custom_call.1} parent=27 // pred_check
          %p511 = pneg %p157
        $region46: #{tpu_custom_call.1} parent=27 // pred_check_branch
          %513 = sbr.rel (%p511) target = $region48
        $region47: #{tpu_custom_call.1} parent=27 // pred_region
          _
        $region48: #{tpu_custom_call.1} parent=27 // pred_fallthru
          _
      $region28: #{tpu_custom_call.1} parent=5 // pred_fallthru
        _
      %p514 = scmp.le.s32.totalorder 2, %s14
      // Predicated region
      $region49: #{tpu_custom_call.1} parent=5 // pred_check
        %p515 = pneg %p514
      $region50: #{tpu_custom_call.1} parent=5 // pred_check_branch
        %517 = sbr.rel (%p515) target = $region52
      $region51: #{tpu_custom_call.1} parent=5 // pred_region
        %s518 = ssub.s32 %s14, 2
        // Predicated region
        $region53: #{tpu_custom_call.1} parent=51 // pred_check
          %p519 = pneg %p111
        $region54: #{tpu_custom_call.1} parent=51 // pred_check_branch
          %521 = sbr.rel (%p519) target = $region56
        $region55: #{tpu_custom_call.1} parent=51 // pred_region
          %p522 = scmp.lt.s32.totalorder %s25, 1
          %s523 = scalar_select %p522, %s25, 1
          %s524 = smul.addr %s523, 4
          %s525 = scalar_lea.vmem %s2, %s524
        $region56: #{tpu_custom_call.1} parent=51 // pred_fallthru
          _
        // Predicated region
        $region57: #{tpu_custom_call.1} parent=51 // pred_check
          %p526 = pneg %p137
        $region58: #{tpu_custom_call.1} parent=51 // pred_check_branch
          %528 = sbr.rel (%p526) target = $region60
        $region59: #{tpu_custom_call.1} parent=51 // pred_region
          %p529 = scmp.lt.s32.totalorder %s25, 1
          %s530 = scalar_select %p529, %s25, 1
          %s531 = smul.addr %s530, 4
          %s532 = scalar_lea.vmem %s3, %s531
        $region60: #{tpu_custom_call.1} parent=51 // pred_fallthru
          _
        // Predicated region
        $region61: #{tpu_custom_call.1} parent=51 // pred_check
          %p533 = pneg %p163
        $region62: #{tpu_custom_call.1} parent=51 // pred_check_branch
          %535 = sbr.rel (%p533) target = $region64
        $region63: #{tpu_custom_call.1} parent=51 // pred_region
          %p536 = scmp.lt.s32.totalorder %s25, 1
          %s537 = scalar_select %p536, %s25, 1
          %s538 = scalar_lea.vmem %s4, %s537
        $region64: #{tpu_custom_call.1} parent=51 // pred_fallthru
          _
      $region52: #{tpu_custom_call.1} parent=5 // pred_fallthru
        _
    $region6: #{tpu_custom_call.1} parent=1 // loop_footer
      %s18 = sadd.s32 1, %s14
    $region7: #{tpu_custom_call.1} parent=1 // loop_footer_branch
      %13 = sbr.rel target = $region3
    $region8: #{tpu_custom_call.1} parent=1 // loop_exit
      _
    %539 = vsyncpa [#allocation3], 1
    %s540 = scalar_lea.sflag [#allocation3], 1
    %541 = vsyncpa %s540, 1

</llo_original>
